<compile_context>
chip_gen: v5e
topology: v5e:2x2
jax: 0.10.0
libtpu: 0.0.40
codegen_flags: <defaults>
</compile_context>

<pallas_src>
import math
import numpy as np

import jax
import jax.numpy as jnp
from jax.experimental import pallas as pl
from jax.experimental.pallas import tpu as pltpu


# --------------------------------------------------------------------------
# Pallas kernel: one (batch row, head) pair per grid step.
# --------------------------------------------------------------------------
def make_kernel(n_head: int, f_pad: int):
    def kernel(q_ref, k_ref, v_ref, cos_ref, sin_ref,
               wq_ref, bq_ref, wk_ref, bk_ref, wv_ref, bv_ref,
               wo_ref, bo_ref, o_ref,
               qr_s, kr_s, v_s, acc_s):
        h = pl.program_id(1)
        f32 = jnp.float32
        bf16 = jnp.bfloat16

        # -- once per batch row: RoPE on q/k (lane roll + sign-folded sin),
        #    cast the MXU operands to bf16, reset the output accumulator. ----
        @pl.when(h == 0)
        def _():
            cos = cos_ref[...]                       # (T, F_pad) f32
            sin_sgn = sin_ref[...]                   # (T, F_pad) f32 (signs folded in)
            q = q_ref[0]                             # (T, F_pad) f32
            k = k_ref[0]
            q_rot = q * cos + pltpu.roll(q, shift=f_pad // 2, axis=1) * sin_sgn
            k_rot = k * cos + pltpu.roll(k, shift=f_pad // 2, axis=1) * sin_sgn
            qr_s[...] = q_rot.astype(bf16)
            kr_s[...] = k_rot.astype(bf16)
            v_s[...] = v_ref[0].astype(bf16)
            acc_s[...] = jnp.zeros_like(acc_s)

        # -- this head's Q/K/V projections (bf16 operands, f32 accumulation).
        #    1/sqrt(d_k) is already folded into wq/bq in the wrapper. --------
        Qh = jnp.dot(qr_s[...], wq_ref[0], preferred_element_type=f32) + bq_ref[0]
        Kh = jnp.dot(kr_s[...], wk_ref[0], preferred_element_type=f32) + bk_ref[0]
        Vh = jnp.dot(v_s[...],  wv_ref[0], preferred_element_type=f32) + bv_ref[0]

        # -- scaled dot-product attention for this head ----------------------
        s = jax.lax.dot_general(Qh.astype(bf16), Kh.astype(bf16),
                                (((1,), (1,)), ((), ())),
                                preferred_element_type=f32)          # (T, T)
        m = jnp.max(s, axis=-1, keepdims=True)
        p = jnp.exp(s - m)
        l = jnp.sum(p, axis=-1, keepdims=True)
        ctx = jnp.dot(p.astype(bf16), Vh.astype(bf16),
                      preferred_element_type=f32)                    # (T, d_k)
        ctx = ctx * pl.reciprocal(l, approx=True)    # deferred softmax normalize

        # -- accumulate this head's slice of the output projection -----------
        acc_s[...] += jnp.dot(ctx.astype(bf16), wo_ref[0],
                              preferred_element_type=f32)            # (T, F_pad)

        @pl.when(h == n_head - 1)
        def _():
            o_ref[0] = (acc_s[...] + bo_ref[...]).astype(o_ref.dtype)

    return kernel


# --------------------------------------------------------------------------
# Wrapper: parameter re-layout (all one-time, host/XLA side) + pallas_call.
# --------------------------------------------------------------------------
def rope_mha_pallas(query, key, value, pe, params, n_head):
    """query/key/value: (B, T, F) f32; pe: (2*max_len, 1, 1, d_k) f32."""
    b, t, f = query.shape
    d_k = f // n_head
    half = d_k // 2
    assert n_head * d_k == f and half * 2 == d_k
    scale = 1.0 / math.sqrt(d_k)
    f_pad = ((f + 127) // 128) * 128
    pad_w = f_pad // 2 - f // 2

    # ---- RotaryPositionalEmbedding.forward: slice cos / sin out of pe ------
    max_len = pe.shape[0] // 2
    cos2 = pe[:t, 0, 0, :]                       # (T, d_k)
    sin2 = pe[max_len:max_len + t, 0, 0, :]      # (T, d_k)

    # ---- feature shuffle: first halves of every head in lanes [0, F/2),
    #      second halves F_pad//2 lanes later -> rotate-half == roll(F_pad//2)
    first_idx = jnp.asarray(np.concatenate(
        [np.arange(h * d_k, h * d_k + half) for h in range(n_head)]))
    second_idx = first_idx + half

    def shuffle_pad(arr, axis):
        arr = jnp.moveaxis(arr, axis, -1)
        z = jnp.zeros(arr.shape[:-1] + (pad_w,), arr.dtype)
        out = jnp.concatenate([jnp.take(arr, first_idx, axis=-1), z,
                               jnp.take(arr, second_idx, axis=-1), z], axis=-1)
        return jnp.moveaxis(out, -1, axis)

    q_p = shuffle_pad(query.astype(jnp.float32), -1)
    k_p = shuffle_pad(key.astype(jnp.float32), -1)
    v_p = shuffle_pad(value.astype(jnp.float32), -1)

    zt = jnp.zeros((t, pad_w), jnp.float32)
    cos_t = jnp.concatenate([jnp.tile(cos2[:, :half], (1, n_head)), zt,
                             jnp.tile(cos2[:, half:], (1, n_head)), zt], axis=-1)
    sin_s = jnp.concatenate([-jnp.tile(sin2[:, :half], (1, n_head)), zt,
                             jnp.tile(sin2[:, half:], (1, n_head)), zt], axis=-1)

    # ---- per-head weight slices (pre-transposed; rows follow the shuffle) --
    def qkv_weights(W, bias, s=1.0):
        wT = shuffle_pad(W.T, 0)                                   # (F_pad, F)
        w3 = jnp.transpose(wT.reshape(f_pad, n_head, d_k), (1, 0, 2)) * s
        b3 = (bias * s).reshape(n_head, 1, d_k).astype(jnp.float32)
        return w3.astype(jnp.bfloat16), b3

    wq3, bq3 = qkv_weights(params["Wq"], params["bq"], scale)   # scale folded in
    wk3, bk3 = qkv_weights(params["Wk"], params["bk"])
    wv3, bv3 = qkv_weights(params["Wv"], params["bv"])

    woT = jnp.pad(params["Wo"].T, ((0, 0), (0, f_pad - f)))     # (F, F_pad)
    wo3 = woT.reshape(n_head, d_k, f_pad).astype(jnp.bfloat16)
    bo2 = jnp.pad(params["bo"], (0, f_pad - f)).reshape(1, f_pad).astype(jnp.float32)

    row_spec = pl.BlockSpec((1, t, f_pad), lambda bi, hi: (bi, 0, 0))
    tab_spec = pl.BlockSpec((t, f_pad), lambda bi, hi: (0, 0))
    wqkv_spec = pl.BlockSpec((1, f_pad, d_k), lambda bi, hi: (hi, 0, 0))
    bqkv_spec = pl.BlockSpec((1, 1, d_k), lambda bi, hi: (hi, 0, 0))
    wo_spec = pl.BlockSpec((1, d_k, f_pad), lambda bi, hi: (hi, 0, 0))
    bo_spec = pl.BlockSpec((1, f_pad), lambda bi, hi: (0, 0))

    out = pl.pallas_call(
        make_kernel(n_head, f_pad),
        out_shape=jax.ShapeDtypeStruct((b, t, f_pad), jnp.float32),
        grid=(b, n_head),
        in_specs=[row_spec, row_spec, row_spec,        # q, k, v
                  tab_spec, tab_spec,                  # cos, sign-folded sin
                  wqkv_spec, bqkv_spec,                # Wq (scaled), bq (scaled)
                  wqkv_spec, bqkv_spec,                # Wk, bk
                  wqkv_spec, bqkv_spec,                # Wv, bv
                  wo_spec, bo_spec],                   # Wo, bo
        out_specs=row_spec,
        scratch_shapes=[pltpu.VMEM((t, f_pad), jnp.bfloat16),   # rope(q)
                        pltpu.VMEM((t, f_pad), jnp.bfloat16),   # rope(k)
                        pltpu.VMEM((t, f_pad), jnp.bfloat16),   # v
                        pltpu.VMEM((t, f_pad), jnp.float32)],   # output accum
        compiler_params=pltpu.CompilerParams(
            dimension_semantics=("parallel", "arbitrary")),
        # TODO(synk): for long sequences add a q-tile grid axis with an online
        # softmax accumulator (and raise vmem_limit_bytes) so the (T, T)
        # score intermediates fit v7x's 64 MiB VMEM.
    )(q_p, k_p, v_p, cos_t, sin_s,
      wq3, bq3, wk3, bk3, wv3, bv3, wo3, bo2)

    return out[:, :, :f]


# --------------------------------------------------------------------------
# Pure-JAX reference (mirrors the PyTorch forward exactly, all f32)
# --------------------------------------------------------------------------
def ref_forward(query, key, value, pe, params, n_head):
    b, t, f = value.shape
    d_k = f // n_head
    max_len = pe.shape[0] // 2
    cos = pe[:t]                                  # (t, 1, 1, d_k)
    sin = pe[max_len:max_len + t]

    def rtt_half(x):
        x1, x2 = x[..., : d_k // 2], x[..., d_k // 2:]
        return jnp.concatenate([-x2, x1], axis=-1)

    q = jnp.transpose(query, (1, 0, 2)).reshape(t, b, n_head, d_k)
    k = jnp.transpose(key, (1, 0, 2)).reshape(t, b, n_head, d_k)
    v = jnp.transpose(value, (1, 0, 2)).reshape(t, b, n_head, d_k)
    q = q * cos + rtt_half(q) * sin
    k = k * cos + rtt_half(k) * sin

    qf = jnp.transpose(q.reshape(t, b, f), (1, 0, 2))
    kf = jnp.transpose(k.reshape(t, b, f), (1, 0, 2))
    vf = jnp.transpose(v.reshape(t, b, f), (1, 0, 2))

    Q = qf @ params["Wq"].T + params["bq"]
    K = kf @ params["Wk"].T + params["bk"]
    V = vf @ params["Wv"].T + params["bv"]
    Q = Q.reshape(b, t, n_head, d_k).transpose(0, 2, 1, 3)
    K = K.reshape(b, t, n_head, d_k).transpose(0, 2, 1, 3)
    V = V.reshape(b, t, n_head, d_k).transpose(0, 2, 1, 3)

    scores = Q @ jnp.swapaxes(K, -2, -1) / math.sqrt(d_k)
    attn = jax.nn.softmax(scores, axis=-1)
    x = (attn @ V).transpose(0, 2, 1, 3).reshape(b, t, f)
    return x @ params["Wo"].T + params["bo"]


# --------------------------------------------------------------------------
if __name__ == "__main__":
    B, T, N_HEAD, N_FEAT = 2, 8, 4, 32
    D_K = N_FEAT // N_HEAD
    MAX_LEN = 16

    key0 = jax.random.PRNGKey(0)
    keys = jax.random.split(key0, 16)

    def init_lin(kw, kb):
        bound = 1.0 / math.sqrt(N_FEAT)
        W = jax.random.uniform(kw, (N_FEAT, N_FEAT), jnp.float32, -bound, bound)
        b_ = jax.random.uniform(kb, (N_FEAT,), jnp.float32, -bound, bound)
        return W, b_

    Wq, bq = init_lin(keys[0], keys[1])
    Wk, bk = init_lin(keys[2], keys[3])
    Wv, bv = init_lin(keys[4], keys[5])
    Wo, bo = init_lin(keys[6], keys[7])
    params = dict(Wq=Wq, bq=bq, Wk=Wk, bk=bk, Wv=Wv, bv=bv, Wo=Wo, bo=bo)

    query = jax.random.normal(keys[8], (B, T, N_FEAT), jnp.float32)
    key_t = jax.random.normal(keys[9], (B, T, N_FEAT), jnp.float32)
    value = jax.random.normal(keys[10], (B, T, N_FEAT), jnp.float32)

    # RotaryPositionalEmbedding.create_pe(MAX_LEN): cos rows stacked over sin
    inv_freq = 1.0 / (10000.0 ** (np.arange(0, D_K, 2, dtype=np.float32) / D_K))
    pos = np.arange(MAX_LEN, dtype=np.float32)
    freqs = np.einsum("i,j->ij", pos, inv_freq)            # (MAX_LEN, D_K/2)
    emb = np.concatenate([freqs, freqs], axis=-1)          # (MAX_LEN, D_K)
    pe = jnp.asarray(np.concatenate([np.cos(emb)[:, None, None, :],
                                     np.sin(emb)[:, None, None, :]], axis=0),
                     jnp.float32)                          # (2*MAX_LEN, 1, 1, D_K)

    out = rope_mha_pallas(query, key_t, value, pe, params, N_HEAD)
    out = jax.block_until_ready(out)

    ref = ref_forward(query, key_t, value, pe, params, N_HEAD)
    np.testing.assert_allclose(np.asarray(out), np.asarray(ref),
                               rtol=2e-2, atol=2e-2)

    print("KERNEL_OK")
</pallas_src>

<mosaic_0001>
module attributes {stable_mosaic.version = 11 : i64} {
  func.func @kernel(%arg0: i32, %arg1: i32, %arg2: memref<1x8x128xf32, #tpu.memory_space<vmem>>, %arg3: memref<1x8x128xf32, #tpu.memory_space<vmem>>, %arg4: memref<1x8x128xf32, #tpu.memory_space<vmem>>, %arg5: memref<8x128xf32, #tpu.memory_space<vmem>>, %arg6: memref<8x128xf32, #tpu.memory_space<vmem>>, %arg7: memref<1x128x8xbf16, #tpu.memory_space<vmem>>, %arg8: memref<1x1x8xf32, #tpu.memory_space<vmem>>, %arg9: memref<1x128x8xbf16, #tpu.memory_space<vmem>>, %arg10: memref<1x1x8xf32, #tpu.memory_space<vmem>>, %arg11: memref<1x128x8xbf16, #tpu.memory_space<vmem>>, %arg12: memref<1x1x8xf32, #tpu.memory_space<vmem>>, %arg13: memref<1x8x128xbf16, #tpu.memory_space<vmem>>, %arg14: memref<1x128xf32, #tpu.memory_space<vmem>>, %arg15: memref<1x8x128xf32, #tpu.memory_space<vmem>>, %arg16: memref<8x128xbf16, #tpu.memory_space<vmem>>, %arg17: memref<8x128xbf16, #tpu.memory_space<vmem>>, %arg18: memref<8x128xbf16, #tpu.memory_space<vmem>>, %arg19: memref<8x128xf32, #tpu.memory_space<vmem>>) attributes {dimension_semantics = [#tpu.dimension_semantics<parallel>, #tpu.dimension_semantics<arbitrary>], iteration_bounds = array<i64: 2, 4>, scalar_prefetch = 0 : i64, scratch_operands = 4 : i64, tpu.core_type = #tpu.core_type<tc>, window_params = [{transform_indices = @transform_0, window_bounds = array<i64: 1, 8, 128>}, {transform_indices = @transform_1, window_bounds = array<i64: 1, 8, 128>}, {transform_indices = @transform_2, window_bounds = array<i64: 1, 8, 128>}, {pipeline_mode = #tpu.pipeline_mode<synchronous>, transform_indices = @transform_3, window_bounds = array<i64: 8, 128>}, {pipeline_mode = #tpu.pipeline_mode<synchronous>, transform_indices = @transform_4, window_bounds = array<i64: 8, 128>}, {transform_indices = @transform_5, window_bounds = array<i64: 1, 128, 8>}, {transform_indices = @transform_6, window_bounds = array<i64: 1, 1, 8>}, {transform_indices = @transform_7, window_bounds = array<i64: 1, 128, 8>}, {transform_indices = @transform_8, window_bounds = array<i64: 1, 1, 8>}, {transform_indices = @transform_9, window_bounds = array<i64: 1, 128, 8>}, {transform_indices = @transform_10, window_bounds = array<i64: 1, 1, 8>}, {transform_indices = @transform_11, window_bounds = array<i64: 1, 8, 128>}, {pipeline_mode = #tpu.pipeline_mode<synchronous>, transform_indices = @transform_12, window_bounds = array<i64: 1, 128>}, {transform_indices = @transform_13, window_bounds = array<i64: 1, 8, 128>}]} {
    %c0_i32 = arith.constant 0 : i32
    %0 = arith.cmpi eq, %arg1, %c0_i32 : i32
    %1 = arith.extui %0 : i1 to i32
    %c0_i32_0 = arith.constant 0 : i32
    %2 = arith.cmpi ne, %1, %c0_i32_0 : i32
    scf.if %2 {
      %c0_39 = arith.constant 0 : index
      %c0_40 = arith.constant 0 : index
      %53 = vector.load %arg5[%c0_39, %c0_40] : memref<8x128xf32, #tpu.memory_space<vmem>>, vector<8x128xf32>
      %c0_41 = arith.constant 0 : index
      %c0_42 = arith.constant 0 : index
      %54 = vector.load %arg6[%c0_41, %c0_42] : memref<8x128xf32, #tpu.memory_space<vmem>>, vector<8x128xf32>
      %c0_43 = arith.constant 0 : index
      %c0_44 = arith.constant 0 : index
      %c0_45 = arith.constant 0 : index
      %55 = vector.load %arg2[%c0_43, %c0_44, %c0_45] : memref<1x8x128xf32, #tpu.memory_space<vmem>>, vector<1x8x128xf32>
      %56 = vector.shape_cast %55 : vector<1x8x128xf32> to vector<8x128xf32>
      %c0_46 = arith.constant 0 : index
      %c0_47 = arith.constant 0 : index
      %c0_48 = arith.constant 0 : index
      %57 = vector.load %arg3[%c0_46, %c0_47, %c0_48] : memref<1x8x128xf32, #tpu.memory_space<vmem>>, vector<1x8x128xf32>
      %58 = vector.shape_cast %57 : vector<1x8x128xf32> to vector<8x128xf32>
      %59 = arith.mulf %56, %53 : vector<8x128xf32>
      %c64_i32 = arith.constant 64 : i32
      %60 = tpu.dynamic_rotate %56 by %c64_i32 dim 1 : vector<8x128xf32>, i32 -> vector<8x128xf32>
      %61 = arith.mulf %60, %54 : vector<8x128xf32>
      %62 = arith.addf %59, %61 : vector<8x128xf32>
      %63 = arith.mulf %58, %53 : vector<8x128xf32>
      %c64_i32_49 = arith.constant 64 : i32
      %64 = tpu.dynamic_rotate %58 by %c64_i32_49 dim 1 : vector<8x128xf32>, i32 -> vector<8x128xf32>
      %65 = arith.mulf %64, %54 : vector<8x128xf32>
      %66 = arith.addf %63, %65 : vector<8x128xf32>
      %67 = arith.truncf %62 : vector<8x128xf32> to vector<8x128xbf16>
      %c0_50 = arith.constant 0 : index
      %c0_51 = arith.constant 0 : index
      %68 = vector.load %arg16[%c0_50, %c0_51] : memref<8x128xbf16, #tpu.memory_space<vmem>>, vector<8x128xbf16>
      tpu.vector_store %arg16[%c0_50, %c0_51], %67 {strides = array<i32>} : memref<8x128xbf16, #tpu.memory_space<vmem>>, vector<8x128xbf16>,
      %69 = arith.truncf %66 : vector<8x128xf32> to vector<8x128xbf16>
      %c0_52 = arith.constant 0 : index
      %c0_53 = arith.constant 0 : index
      %70 = vector.load %arg17[%c0_52, %c0_53] : memref<8x128xbf16, #tpu.memory_space<vmem>>, vector<8x128xbf16>
      tpu.vector_store %arg17[%c0_52, %c0_53], %69 {strides = array<i32>} : memref<8x128xbf16, #tpu.memory_space<vmem>>, vector<8x128xbf16>,
      %c0_54 = arith.constant 0 : index
      %c0_55 = arith.constant 0 : index
      %c0_56 = arith.constant 0 : index
      %71 = vector.load %arg4[%c0_54, %c0_55, %c0_56] : memref<1x8x128xf32, #tpu.memory_space<vmem>>, vector<1x8x128xf32>
      %72 = vector.shape_cast %71 : vector<1x8x128xf32> to vector<8x128xf32>
      %73 = arith.truncf %72 : vector<8x128xf32> to vector<8x128xbf16>
      %c0_57 = arith.constant 0 : index
      %c0_58 = arith.constant 0 : index
      %74 = vector.load %arg18[%c0_57, %c0_58] : memref<8x128xbf16, #tpu.memory_space<vmem>>, vector<8x128xbf16>
      tpu.vector_store %arg18[%c0_57, %c0_58], %73 {strides = array<i32>} : memref<8x128xbf16, #tpu.memory_space<vmem>>, vector<8x128xbf16>,
      %cst_59 = arith.constant 0.000000e+00 : f32
      %75 = vector.broadcast %cst_59 : f32 to vector<8x128xf32>
      %c0_60 = arith.constant 0 : index
      %c0_61 = arith.constant 0 : index
      %76 = vector.load %arg19[%c0_60, %c0_61] : memref<8x128xf32, #tpu.memory_space<vmem>>, vector<8x128xf32>
      tpu.vector_store %arg19[%c0_60, %c0_61], %75 {strides = array<i32>} : memref<8x128xf32, #tpu.memory_space<vmem>>, vector<8x128xf32>,
    } else {
    }
    %c0 = arith.constant 0 : index
    %c0_1 = arith.constant 0 : index
    %3 = vector.load %arg16[%c0, %c0_1] : memref<8x128xbf16, #tpu.memory_space<vmem>>, vector<8x128xbf16>
    %c0_2 = arith.constant 0 : index
    %c0_3 = arith.constant 0 : index
    %c0_4 = arith.constant 0 : index
    %4 = vector.load %arg7[%c0_2, %c0_3, %c0_4] : memref<1x128x8xbf16, #tpu.memory_space<vmem>>, vector<1x128x8xbf16>
    %5 = vector.shape_cast %4 : vector<1x128x8xbf16> to vector<128x8xbf16>
    %cst = arith.constant dense<0.000000e+00> : vector<8x8xf32>
    %6 = tpu.matmul %3, %5, %cst {dimension_numbers = #tpu.dot_dimension_numbers<[1], [0], [0], [1], [0, 0, 1, 1], [], []>} : vector<8x128xbf16>, vector<128x8xbf16>, vector<8x8xf32> -> vector<8x8xf32>
    %c0_5 = arith.constant 0 : index
    %c0_6 = arith.constant 0 : index
    %c0_7 = arith.constant 0 : index
    %7 = vector.load %arg8[%c0_5, %c0_6, %c0_7] : memref<1x1x8xf32, #tpu.memory_space<vmem>>, vector<1x1x8xf32>
    %8 = vector.shape_cast %7 : vector<1x1x8xf32> to vector<1x8xf32>
    %9 = vector.broadcast %8 : vector<1x8xf32> to vector<8x8xf32>
    %10 = arith.addf %6, %9 : vector<8x8xf32>
    %c0_8 = arith.constant 0 : index
    %c0_9 = arith.constant 0 : index
    %11 = vector.load %arg17[%c0_8, %c0_9] : memref<8x128xbf16, #tpu.memory_space<vmem>>, vector<8x128xbf16>
    %c0_10 = arith.constant 0 : index
    %c0_11 = arith.constant 0 : index
    %c0_12 = arith.constant 0 : index
    %12 = vector.load %arg9[%c0_10, %c0_11, %c0_12] : memref<1x128x8xbf16, #tpu.memory_space<vmem>>, vector<1x128x8xbf16>
    %13 = vector.shape_cast %12 : vector<1x128x8xbf16> to vector<128x8xbf16>
    %cst_13 = arith.constant dense<0.000000e+00> : vector<8x8xf32>
    %14 = tpu.matmul %11, %13, %cst_13 {dimension_numbers = #tpu.dot_dimension_numbers<[1], [0], [0], [1], [0, 0, 1, 1], [], []>} : vector<8x128xbf16>, vector<128x8xbf16>, vector<8x8xf32> -> vector<8x8xf32>
    %c0_14 = arith.constant 0 : index
    %c0_15 = arith.constant 0 : index
    %c0_16 = arith.constant 0 : index
    %15 = vector.load %arg10[%c0_14, %c0_15, %c0_16] : memref<1x1x8xf32, #tpu.memory_space<vmem>>, vector<1x1x8xf32>
    %16 = vector.shape_cast %15 : vector<1x1x8xf32> to vector<1x8xf32>
    %17 = vector.broadcast %16 : vector<1x8xf32> to vector<8x8xf32>
    %18 = arith.addf %14, %17 : vector<8x8xf32>
    %c0_17 = arith.constant 0 : index
    %c0_18 = arith.constant 0 : index
    %19 = vector.load %arg18[%c0_17, %c0_18] : memref<8x128xbf16, #tpu.memory_space<vmem>>, vector<8x128xbf16>
    %c0_19 = arith.constant 0 : index
    %c0_20 = arith.constant 0 : index
    %c0_21 = arith.constant 0 : index
    %20 = vector.load %arg11[%c0_19, %c0_20, %c0_21] : memref<1x128x8xbf16, #tpu.memory_space<vmem>>, vector<1x128x8xbf16>
    %21 = vector.shape_cast %20 : vector<1x128x8xbf16> to vector<128x8xbf16>
    %cst_22 = arith.constant dense<0.000000e+00> : vector<8x8xf32>
    %22 = tpu.matmul %19, %21, %cst_22 {dimension_numbers = #tpu.dot_dimension_numbers<[1], [0], [0], [1], [0, 0, 1, 1], [], []>} : vector<8x128xbf16>, vector<128x8xbf16>, vector<8x8xf32> -> vector<8x8xf32>
    %c0_23 = arith.constant 0 : index
    %c0_24 = arith.constant 0 : index
    %c0_25 = arith.constant 0 : index
    %23 = vector.load %arg12[%c0_23, %c0_24, %c0_25] : memref<1x1x8xf32, #tpu.memory_space<vmem>>, vector<1x1x8xf32>
    %24 = vector.shape_cast %23 : vector<1x1x8xf32> to vector<1x8xf32>
    %25 = vector.broadcast %24 : vector<1x8xf32> to vector<8x8xf32>
    %26 = arith.addf %22, %25 : vector<8x8xf32>
    %27 = arith.truncf %10 : vector<8x8xf32> to vector<8x8xbf16>
    %28 = arith.truncf %18 : vector<8x8xf32> to vector<8x8xbf16>
    %cst_26 = arith.constant dense<0.000000e+00> : vector<8x8xf32>
    %29 = tpu.matmul %27, %28, %cst_26 {dimension_numbers = #tpu.dot_dimension_numbers<[1], [1], [0], [0], [0, 0, 1, 0], [], []>} : vector<8x8xbf16>, vector<8x8xbf16>, vector<8x8xf32> -> vector<8x8xf32>
    %cst_27 = arith.constant dense<0xFF800000> : vector<8xf32>
    %30 = vector.multi_reduction <maximumf>, %29, %cst_27 [1] : vector<8x8xf32> to vector<8xf32>
    %31 = vector.shape_cast %30 : vector<8xf32> to vector<8x1xf32>
    %32 = vector.broadcast %31 : vector<8x1xf32> to vector<8x8xf32>
    %33 = arith.subf %29, %32 : vector<8x8xf32>
    %34 = math.exp %33 : vector<8x8xf32>
    %cst_28 = arith.constant dense<0.000000e+00> : vector<8xf32>
    %35 = vector.multi_reduction <add>, %34, %cst_28 [1] : vector<8x8xf32> to vector<8xf32>
    %36 = vector.shape_cast %35 : vector<8xf32> to vector<8x1xf32>
    %37 = arith.truncf %34 : vector<8x8xf32> to vector<8x8xbf16>
    %38 = arith.truncf %26 : vector<8x8xf32> to vector<8x8xbf16>
    %cst_29 = arith.constant dense<0.000000e+00> : vector<8x8xf32>
    %39 = tpu.matmul %37, %38, %cst_29 {dimension_numbers = #tpu.dot_dimension_numbers<[1], [0], [0], [1], [0, 0, 1, 1], [], []>} : vector<8x8xbf16>, vector<8x8xbf16>, vector<8x8xf32> -> vector<8x8xf32>
    %40 = tpu.reciprocal %36 {approx = true} : vector<8x1xf32> -> vector<8x1xf32>
    %41 = vector.broadcast %40 : vector<8x1xf32> to vector<8x8xf32>
    %42 = arith.mulf %39, %41 : vector<8x8xf32>
    %c0_30 = arith.constant 0 : index
    %c0_31 = arith.constant 0 : index
    %43 = vector.load %arg19[%c0_30, %c0_31] : memref<8x128xf32, #tpu.memory_space<vmem>>, vector<8x128xf32>
    %44 = arith.truncf %42 : vector<8x8xf32> to vector<8x8xbf16>
    %c0_32 = arith.constant 0 : index
    %c0_33 = arith.constant 0 : index
    %c0_34 = arith.constant 0 : index
    %45 = vector.load %arg13[%c0_32, %c0_33, %c0_34] : memref<1x8x128xbf16, #tpu.memory_space<vmem>>, vector<1x8x128xbf16>
    %46 = vector.shape_cast %45 : vector<1x8x128xbf16> to vector<8x128xbf16>
    %cst_35 = arith.constant dense<0.000000e+00> : vector<8x128xf32>
    %47 = tpu.matmul %44, %46, %cst_35 {dimension_numbers = #tpu.dot_dimension_numbers<[1], [0], [0], [1], [0, 0, 1, 1], [], []>} : vector<8x8xbf16>, vector<8x128xbf16>, vector<8x128xf32> -> vector<8x128xf32>
    %48 = arith.addf %43, %47 : vector<8x128xf32>
    %c0_36 = arith.constant 0 : index
    %c0_37 = arith.constant 0 : index
    %49 = vector.load %arg19[%c0_36, %c0_37] : memref<8x128xf32, #tpu.memory_space<vmem>>, vector<8x128xf32>
    tpu.vector_store %arg19[%c0_36, %c0_37], %48 {strides = array<i32>} : memref<8x128xf32, #tpu.memory_space<vmem>>, vector<8x128xf32>,
    %c3_i32 = arith.constant 3 : i32
    %50 = arith.cmpi eq, %arg1, %c3_i32 : i32
    %51 = arith.extui %50 : i1 to i32
    %c0_i32_38 = arith.constant 0 : i32
    %52 = arith.cmpi ne, %51, %c0_i32_38 : i32
    scf.if %52 {
      %c0_39 = arith.constant 0 : index
      %c0_40 = arith.constant 0 : index
      %53 = vector.load %arg19[%c0_39, %c0_40] : memref<8x128xf32, #tpu.memory_space<vmem>>, vector<8x128xf32>
      %c0_41 = arith.constant 0 : index
      %c0_42 = arith.constant 0 : index
      %54 = vector.load %arg14[%c0_41, %c0_42] : memref<1x128xf32, #tpu.memory_space<vmem>>, vector<1x128xf32>
      %55 = vector.broadcast %54 : vector<1x128xf32> to vector<8x128xf32>
      %56 = arith.addf %53, %55 : vector<8x128xf32>
      %c0_43 = arith.constant 0 : index
      %c0_44 = arith.constant 0 : index
      %c0_45 = arith.constant 0 : index
      %57 = vector.load %arg15[%c0_43, %c0_44, %c0_45] : memref<1x8x128xf32, #tpu.memory_space<vmem>>, vector<1x8x128xf32>
      %58 = vector.shape_cast %57 : vector<1x8x128xf32> to vector<8x128xf32>
      %59 = vector.shape_cast %56 : vector<8x128xf32> to vector<1x8x128xf32>
      tpu.vector_store %arg15[%c0_43, %c0_44, %c0_45], %59 {strides = array<i32>} : memref<1x8x128xf32, #tpu.memory_space<vmem>>, vector<1x8x128xf32>,
    } else {
    }
    return
  }
  func.func @transform_0(%arg0: i32, %arg1: i32) -> (i32, i32, i32) {
    %c0_i32 = arith.constant 0 : i32
    %c0_i32_0 = arith.constant 0 : i32
    %c0_i32_1 = arith.constant 0 : i32
    return %arg0, %c0_i32, %c0_i32_0 : i32, i32, i32
  }
  func.func @transform_1(%arg0: i32, %arg1: i32) -> (i32, i32, i32) {
    %c0_i32 = arith.constant 0 : i32
    %c0_i32_0 = arith.constant 0 : i32
    %c0_i32_1 = arith.constant 0 : i32
    return %arg0, %c0_i32, %c0_i32_0 : i32, i32, i32
  }
  func.func @transform_2(%arg0: i32, %arg1: i32) -> (i32, i32, i32) {
    %c0_i32 = arith.constant 0 : i32
    %c0_i32_0 = arith.constant 0 : i32
    %c0_i32_1 = arith.constant 0 : i32
    return %arg0, %c0_i32, %c0_i32_0 : i32, i32, i32
  }
  func.func @transform_3(%arg0: i32, %arg1: i32) -> (i32, i32) {
    %c0_i32 = arith.constant 0 : i32
    %c0_i32_0 = arith.constant 0 : i32
    %c0_i32_1 = arith.constant 0 : i32
    return %c0_i32, %c0_i32_0 : i32, i32
  }
  func.func @transform_4(%arg0: i32, %arg1: i32) -> (i32, i32) {
    %c0_i32 = arith.constant 0 : i32
    %c0_i32_0 = arith.constant 0 : i32
    %c0_i32_1 = arith.constant 0 : i32
    return %c0_i32, %c0_i32_0 : i32, i32
  }
  func.func @transform_5(%arg0: i32, %arg1: i32) -> (i32, i32, i32) {
    %c0_i32 = arith.constant 0 : i32
    %c0_i32_0 = arith.constant 0 : i32
    %c0_i32_1 = arith.constant 0 : i32
    return %arg1, %c0_i32, %c0_i32_0 : i32, i32, i32
  }
  func.func @transform_6(%arg0: i32, %arg1: i32) -> (i32, i32, i32) {
    %c0_i32 = arith.constant 0 : i32
    %c0_i32_0 = arith.constant 0 : i32
    %c0_i32_1 = arith.constant 0 : i32
    return %arg1, %c0_i32, %c0_i32_0 : i32, i32, i32
  }
  func.func @transform_7(%arg0: i32, %arg1: i32) -> (i32, i32, i32) {
    %c0_i32 = arith.constant 0 : i32
    %c0_i32_0 = arith.constant 0 : i32
    %c0_i32_1 = arith.constant 0 : i32
    return %arg1, %c0_i32, %c0_i32_0 : i32, i32, i32
  }
  func.func @transform_8(%arg0: i32, %arg1: i32) -> (i32, i32, i32) {
    %c0_i32 = arith.constant 0 : i32
    %c0_i32_0 = arith.constant 0 : i32
    %c0_i32_1 = arith.constant 0 : i32
    return %arg1, %c0_i32, %c0_i32_0 : i32, i32, i32
  }
  func.func @transform_9(%arg0: i32, %arg1: i32) -> (i32, i32, i32) {
    %c0_i32 = arith.constant 0 : i32
    %c0_i32_0 = arith.constant 0 : i32
    %c0_i32_1 = arith.constant 0 : i32
    return %arg1, %c0_i32, %c0_i32_0 : i32, i32, i32
  }
  func.func @transform_10(%arg0: i32, %arg1: i32) -> (i32, i32, i32) {
    %c0_i32 = arith.constant 0 : i32
    %c0_i32_0 = arith.constant 0 : i32
    %c0_i32_1 = arith.constant 0 : i32
    return %arg1, %c0_i32, %c0_i32_0 : i32, i32, i32
  }
  func.func @transform_11(%arg0: i32, %arg1: i32) -> (i32, i32, i32) {
    %c0_i32 = arith.constant 0 : i32
    %c0_i32_0 = arith.constant 0 : i32
    %c0_i32_1 = arith.constant 0 : i32
    return %arg1, %c0_i32, %c0_i32_0 : i32, i32, i32
  }
  func.func @transform_12(%arg0: i32, %arg1: i32) -> (i32, i32) {
    %c0_i32 = arith.constant 0 : i32
    %c0_i32_0 = arith.constant 0 : i32
    %c0_i32_1 = arith.constant 0 : i32
    return %c0_i32, %c0_i32_0 : i32, i32
  }
  func.func @transform_13(%arg0: i32, %arg1: i32) -> (i32, i32, i32) {
    %c0_i32 = arith.constant 0 : i32
    %c0_i32_0 = arith.constant 0 : i32
    %c0_i32_1 = arith.constant 0 : i32
    return %arg0, %c0_i32, %c0_i32_0 : i32, i32, i32
  }
}

</mosaic_0001>

<llo_original>
// kernel: tpu_custom_call.1
$region0: #{tpu_custom_call.1}
  #allocation0 [shape = 'u32[]', space=smem, size = 0x4, offset = 0x4, fixed_abs, tag = 'smem constant byte address 0x4 - core index']
  #allocation1 [shape = 'u32[72,128]{1,0:T(1,128)}', space=vmem, size = 0x9000, scoped, tag = 'internal scratch']
  #allocation2 [shape = 'bf16[8,128]{1,0:T(8,128)(2,1)}', space=vmem, size = 0x800, scoped, tag = 'scratch operand']
  #allocation3 [shape = 'bf16[8,128]{1,0:T(8,128)(2,1)}', space=vmem, size = 0x800, scoped, tag = 'scratch operand']
  #allocation4 [shape = 'bf16[8,128]{1,0:T(8,128)(2,1)}', space=vmem, size = 0x800, scoped, tag = 'scratch operand']
  #allocation5 [shape = 'f32[8,128]{1,0:T(8,128)}', space=vmem, size = 0x1000, scoped, tag = 'scratch operand']
  %s0 = inlined_call_operand.vmem [shape: f32[2,8,128], index: 0, kind: input, shape index: {}]
  %s1 = inlined_call_operand.vmem [shape: f32[2,8,128], index: 1, kind: input, shape index: {}]
  %s2 = inlined_call_operand.vmem [shape: f32[2,8,128], index: 2, kind: input, shape index: {}]
  %s3 = inlined_call_operand.vmem [shape: f32[8,128], index: 3, kind: input, shape index: {}]
  %s4 = inlined_call_operand.vmem [shape: f32[8,128], index: 4, kind: input, shape index: {}]
  %s5 = inlined_call_operand.vmem [shape: bf16[4,128,8], index: 5, kind: input, shape index: {}]
  %s6 = inlined_call_operand.vmem [shape: f32[4,1,8], index: 6, kind: input, shape index: {}]
  %s7 = inlined_call_operand.vmem [shape: bf16[4,128,8], index: 7, kind: input, shape index: {}]
  %s8 = inlined_call_operand.vmem [shape: f32[4,1,8], index: 8, kind: input, shape index: {}]
  %s9 = inlined_call_operand.vmem [shape: bf16[4,128,8], index: 9, kind: input, shape index: {}]
  %s10 = inlined_call_operand.vmem [shape: f32[4,1,8], index: 10, kind: input, shape index: {}]
  %s11 = inlined_call_operand.vmem [shape: bf16[4,8,128], index: 11, kind: input, shape index: {}]
  %s12 = inlined_call_operand.vmem [shape: f32[1,128], index: 12, kind: input, shape index: {}]
  %s13 = inlined_call_operand.hbm [shape: f32[2,8,128], index: 13, kind: output, shape index: {}]
  %s14 = sld [smem:[#allocation0]]
  $region93: #{tpu_custom_call.1} parent=0
    _
  %s16 = ssub.s32 1, %s14
  %s17 = scalar_select 0, %s16, %s14
  $region1: #{tpu_custom_call.1} parent=0
    #allocation6 [shape = 'u8[8192]{0}', space=vmem, size = 0x2000, scoped, tag = 'output window, operand 0']
    #allocation7 [shape = 's32[2]{0}', space=sflag, size = 0x8, scoped, tag = 'scoped memory for tpu_custom_call.1']
    %18 = vsyncpa [#allocation7], 0
    %s19 = scalar_lea.sflag [#allocation7], 1
    %20 = vsyncpa %s19, 0
    loop: start=0, step=1, limit=10
    $region2: #{tpu_custom_call.1} parent=1 // loop_pre_header
      _
    $region3: #{tpu_custom_call.1} parent=1 // loop_header
      %s22 = sphi 0, %s26
      %p23 = scmp.ge.s32.totalorder %s22, 10
      %s29 = sphi 0, %s41
      %s30 = sphi 0, %s37
      %s31 = sphi 0, %s29
      %s32 = sphi 0, %s30
      %s33 = sphi 0, %s31
      %s34 = sphi 0, %s32
      %s44 = sphi 0, %s46
      %s47 = sphi 0, %s44
      %s48 = sphi 0, %s47
      %s64 = sphi 0, %s48
      %s70 = sphi 0, %s72
      %s73 = sphi 0, %s70
      %s74 = sphi 0, %s73
      %s90 = sphi 0, %s74
      %s96 = sphi 0, %s98
      %s99 = sphi 0, %s96
      %s100 = sphi 0, %s99
      %s116 = sphi 0, %s100
      %s120 = sphi 0, %s120
      %s122 = sphi 0, %s120
      %s123 = sphi 0, %s122
      %s137 = sphi 0, %s123
      %s141 = sphi 0, %s141
      %s143 = sphi 0, %s141
      %s144 = sphi 0, %s143
      %s158 = sphi 0, %s144
      %s164 = sphi 0, %s166
      %s167 = sphi 0, %s164
      %s168 = sphi 0, %s167
      %s184 = sphi 0, %s168
      %s190 = sphi 0, %s192
      %s193 = sphi 0, %s190
      %s194 = sphi 0, %s193
      %s210 = sphi 0, %s194
      %s216 = sphi 0, %s218
      %s219 = sphi 0, %s216
      %s220 = sphi 0, %s219
      %s236 = sphi 0, %s220
      %s242 = sphi 0, %s244
      %s245 = sphi 0, %s242
      %s246 = sphi 0, %s245
      %s262 = sphi 0, %s246
      %s268 = sphi 0, %s270
      %s271 = sphi 0, %s268
      %s272 = sphi 0, %s271
      %s288 = sphi 0, %s272
      %s294 = sphi 0, %s296
      %s297 = sphi 0, %s294
      %s298 = sphi 0, %s297
      %s314 = sphi 0, %s298
      %s320 = sphi 0, %s322
      %s323 = sphi 0, %s320
      %s324 = sphi 0, %s323
      %s340 = sphi 0, %s324
      %s344 = sphi 0, %s344
      %s346 = sphi 0, %s344
      %s347 = sphi 0, %s346
      %s361 = sphi 0, %s347
      %s367 = sphi 0, %s369
      %s370 = sphi 0, %s367
      %s371 = sphi 0, %s370
      %s387 = sphi 0, %s371
    $region4: #{tpu_custom_call.1} parent=1 // loop_header_branch
      %25 = sbr.rel (%p23) target = $region8
    $region5: #{tpu_custom_call.1} parent=1 // loop_body
      %s27 = ssub.s32 %s22, 1
      %s28 = ssub.s32 %s22, 2
      %s35 = sadd.s32 1, %s30
      %p36 = scmp.ge.s32.totalorder %s35, 4
      %s37 = scalar_select %p36, 0, %s35
      %s38 = sadd.s32 1, %s29
      %s39 = scalar_select %p36, %s38, %s29
      %p40 = scmp.ge.s32.totalorder %s39, 2
      %s41 = scalar_select %p40, 0, %s39
      %s42 = ssub.s32 %s29, %s41
      %p43 = scmp.eq.s32.totalorder %s42, 0
      %s45 = sadd.s32 %s44, 1
      %s46 = scalar_select %p43, %s44, %s45
      %p49 = pneg %p43
      %p50 = scmp.eq.s32.totalorder %s22, 7
      %p51 = por %p49, %p50
      %p52 = scmp.ne.s32.totalorder %s44, %s47
      %p53 = scmp.eq.s32.totalorder %s22, 0
      %p54 = por %p52, %p53
      %p55 = scmp.ne.s32.totalorder %s44, %s47
      %p56 = scmp.eq.s32.totalorder %s27, 7
      %p57 = por %p55, %p56
      %p58 = scmp.ne.s32.totalorder %s47, %s48
      %p59 = scmp.eq.s32.totalorder %s27, 0
      %p60 = por %p58, %p59
      %p61 = scmp.ne.s32.totalorder %s47, %s48
      %p62 = scmp.eq.s32.totalorder %s28, 7
      %p63 = por %p61, %p62
      %p65 = scmp.ne.s32.totalorder %s48, %s64
      %p66 = scmp.eq.s32.totalorder %s28, 0
      %p67 = por %p65, %p66
      %s68 = ssub.s32 %s29, %s41
      %p69 = scmp.eq.s32.totalorder %s68, 0
      %s71 = sadd.s32 %s70, 1
      %s72 = scalar_select %p69, %s70, %s71
      %p75 = pneg %p69
      %p76 = scmp.eq.s32.totalorder %s22, 7
      %p77 = por %p75, %p76
      %p78 = scmp.ne.s32.totalorder %s70, %s73
      %p79 = scmp.eq.s32.totalorder %s22, 0
      %p80 = por %p78, %p79
      %p81 = scmp.ne.s32.totalorder %s70, %s73
      %p82 = scmp.eq.s32.totalorder %s27, 7
      %p83 = por %p81, %p82
      %p84 = scmp.ne.s32.totalorder %s73, %s74
      %p85 = scmp.eq.s32.totalorder %s27, 0
      %p86 = por %p84, %p85
      %p87 = scmp.ne.s32.totalorder %s73, %s74
      %p88 = scmp.eq.s32.totalorder %s28, 7
      %p89 = por %p87, %p88
      %p91 = scmp.ne.s32.totalorder %s74, %s90
      %p92 = scmp.eq.s32.totalorder %s28, 0
      %p93 = por %p91, %p92
      %s94 = ssub.s32 %s29, %s41
      %p95 = scmp.eq.s32.totalorder %s94, 0
      %s97 = sadd.s32 %s96, 1
      %s98 = scalar_select %p95, %s96, %s97
      %p101 = pneg %p95
      %p102 = scmp.eq.s32.totalorder %s22, 7
      %p103 = por %p101, %p102
      %p104 = scmp.ne.s32.totalorder %s96, %s99
      %p105 = scmp.eq.s32.totalorder %s22, 0
      %p106 = por %p104, %p105
      %p107 = scmp.ne.s32.totalorder %s96, %s99
      %p108 = scmp.eq.s32.totalorder %s27, 7
      %p109 = por %p107, %p108
      %p110 = scmp.ne.s32.totalorder %s99, %s100
      %p111 = scmp.eq.s32.totalorder %s27, 0
      %p112 = por %p110, %p111
      %p113 = scmp.ne.s32.totalorder %s99, %s100
      %p114 = scmp.eq.s32.totalorder %s28, 7
      %p115 = por %p113, %p114
      %p117 = scmp.ne.s32.totalorder %s100, %s116
      %p118 = scmp.eq.s32.totalorder %s28, 0
      %p119 = por %p117, %p118
      %s121 = sadd.s32 %s120, 1
      %p124 = scmp.eq.s32.totalorder %s22, 7
      %p125 = scmp.ne.s32.totalorder %s120, %s122
      %p126 = scmp.eq.s32.totalorder %s22, 0
      %p127 = por %p125, %p126
      %p128 = scmp.ne.s32.totalorder %s120, %s122
      %p129 = scmp.eq.s32.totalorder %s27, 7
      %p130 = por %p128, %p129
      %p131 = scmp.ne.s32.totalorder %s122, %s123
      %p132 = scmp.eq.s32.totalorder %s27, 0
      %p133 = por %p131, %p132
      %p134 = scmp.ne.s32.totalorder %s122, %s123
      %p135 = scmp.eq.s32.totalorder %s28, 7
      %p136 = por %p134, %p135
      %p138 = scmp.ne.s32.totalorder %s123, %s137
      %p139 = scmp.eq.s32.totalorder %s28, 0
      %p140 = por %p138, %p139
      %s142 = sadd.s32 %s141, 1
      %p145 = scmp.eq.s32.totalorder %s22, 7
      %p146 = scmp.ne.s32.totalorder %s141, %s143
      %p147 = scmp.eq.s32.totalorder %s22, 0
      %p148 = por %p146, %p147
      %p149 = scmp.ne.s32.totalorder %s141, %s143
      %p150 = scmp.eq.s32.totalorder %s27, 7
      %p151 = por %p149, %p150
      %p152 = scmp.ne.s32.totalorder %s143, %s144
      %p153 = scmp.eq.s32.totalorder %s27, 0
      %p154 = por %p152, %p153
      %p155 = scmp.ne.s32.totalorder %s143, %s144
      %p156 = scmp.eq.s32.totalorder %s28, 7
      %p157 = por %p155, %p156
      %p159 = scmp.ne.s32.totalorder %s144, %s158
      %p160 = scmp.eq.s32.totalorder %s28, 0
      %p161 = por %p159, %p160
      %s162 = ssub.s32 %s30, %s37
      %p163 = scmp.eq.s32.totalorder %s162, 0
      %s165 = sadd.s32 %s164, 1
      %s166 = scalar_select %p163, %s164, %s165
      %p169 = pneg %p163
      %p170 = scmp.eq.s32.totalorder %s22, 7
      %p171 = por %p169, %p170
      %p172 = scmp.ne.s32.totalorder %s164, %s167
      %p173 = scmp.eq.s32.totalorder %s22, 0
      %p174 = por %p172, %p173
      %p175 = scmp.ne.s32.totalorder %s164, %s167
      %p176 = scmp.eq.s32.totalorder %s27, 7
      %p177 = por %p175, %p176
      %p178 = scmp.ne.s32.totalorder %s167, %s168
      %p179 = scmp.eq.s32.totalorder %s27, 0
      %p180 = por %p178, %p179
      %p181 = scmp.ne.s32.totalorder %s167, %s168
      %p182 = scmp.eq.s32.totalorder %s28, 7
      %p183 = por %p181, %p182
      %p185 = scmp.ne.s32.totalorder %s168, %s184
      %p186 = scmp.eq.s32.totalorder %s28, 0
      %p187 = por %p185, %p186
      %s188 = ssub.s32 %s30, %s37
      %p189 = scmp.eq.s32.totalorder %s188, 0
      %s191 = sadd.s32 %s190, 1
      %s192 = scalar_select %p189, %s190, %s191
      %p195 = pneg %p189
      %p196 = scmp.eq.s32.totalorder %s22, 7
      %p197 = por %p195, %p196
      %p198 = scmp.ne.s32.totalorder %s190, %s193
      %p199 = scmp.eq.s32.totalorder %s22, 0
      %p200 = por %p198, %p199
      %p201 = scmp.ne.s32.totalorder %s190, %s193
      %p202 = scmp.eq.s32.totalorder %s27, 7
      %p203 = por %p201, %p202
      %p204 = scmp.ne.s32.totalorder %s193, %s194
      %p205 = scmp.eq.s32.totalorder %s27, 0
      %p206 = por %p204, %p205
      %p207 = scmp.ne.s32.totalorder %s193, %s194
      %p208 = scmp.eq.s32.totalorder %s28, 7
      %p209 = por %p207, %p208
      %p211 = scmp.ne.s32.totalorder %s194, %s210
      %p212 = scmp.eq.s32.totalorder %s28, 0
      %p213 = por %p211, %p212
      %s214 = ssub.s32 %s30, %s37
      %p215 = scmp.eq.s32.totalorder %s214, 0
      %s217 = sadd.s32 %s216, 1
      %s218 = scalar_select %p215, %s216, %s217
      %p221 = pneg %p215
      %p222 = scmp.eq.s32.totalorder %s22, 7
      %p223 = por %p221, %p222
      %p224 = scmp.ne.s32.totalorder %s216, %s219
      %p225 = scmp.eq.s32.totalorder %s22, 0
      %p226 = por %p224, %p225
      %p227 = scmp.ne.s32.totalorder %s216, %s219
      %p228 = scmp.eq.s32.totalorder %s27, 7
      %p229 = por %p227, %p228
      %p230 = scmp.ne.s32.totalorder %s219, %s220
      %p231 = scmp.eq.s32.totalorder %s27, 0
      %p232 = por %p230, %p231
      %p233 = scmp.ne.s32.totalorder %s219, %s220
      %p234 = scmp.eq.s32.totalorder %s28, 7
      %p235 = por %p233, %p234
      %p237 = scmp.ne.s32.totalorder %s220, %s236
      %p238 = scmp.eq.s32.totalorder %s28, 0
      %p239 = por %p237, %p238
      %s240 = ssub.s32 %s30, %s37
      %p241 = scmp.eq.s32.totalorder %s240, 0
      %s243 = sadd.s32 %s242, 1
      %s244 = scalar_select %p241, %s242, %s243
      %p247 = pneg %p241
      %p248 = scmp.eq.s32.totalorder %s22, 7
      %p249 = por %p247, %p248
      %p250 = scmp.ne.s32.totalorder %s242, %s245
      %p251 = scmp.eq.s32.totalorder %s22, 0
      %p252 = por %p250, %p251
      %p253 = scmp.ne.s32.totalorder %s242, %s245
      %p254 = scmp.eq.s32.totalorder %s27, 7
      %p255 = por %p253, %p254
      %p256 = scmp.ne.s32.totalorder %s245, %s246
      %p257 = scmp.eq.s32.totalorder %s27, 0
      %p258 = por %p256, %p257
      %p259 = scmp.ne.s32.totalorder %s245, %s246
      %p260 = scmp.eq.s32.totalorder %s28, 7
      %p261 = por %p259, %p260
      %p263 = scmp.ne.s32.totalorder %s246, %s262
      %p264 = scmp.eq.s32.totalorder %s28, 0
      %p265 = por %p263, %p264
      %s266 = ssub.s32 %s30, %s37
      %p267 = scmp.eq.s32.totalorder %s266, 0
      %s269 = sadd.s32 %s268, 1
      %s270 = scalar_select %p267, %s268, %s269
      %p273 = pneg %p267
      %p274 = scmp.eq.s32.totalorder %s22, 7
      %p275 = por %p273, %p274
      %p276 = scmp.ne.s32.totalorder %s268, %s271
      %p277 = scmp.eq.s32.totalorder %s22, 0
      %p278 = por %p276, %p277
      %p279 = scmp.ne.s32.totalorder %s268, %s271
      %p280 = scmp.eq.s32.totalorder %s27, 7
      %p281 = por %p279, %p280
      %p282 = scmp.ne.s32.totalorder %s271, %s272
      %p283 = scmp.eq.s32.totalorder %s27, 0
      %p284 = por %p282, %p283
      %p285 = scmp.ne.s32.totalorder %s271, %s272
      %p286 = scmp.eq.s32.totalorder %s28, 7
      %p287 = por %p285, %p286
      %p289 = scmp.ne.s32.totalorder %s272, %s288
      %p290 = scmp.eq.s32.totalorder %s28, 0
      %p291 = por %p289, %p290
      %s292 = ssub.s32 %s30, %s37
      %p293 = scmp.eq.s32.totalorder %s292, 0
      %s295 = sadd.s32 %s294, 1
      %s296 = scalar_select %p293, %s294, %s295
      %p299 = pneg %p293
      %p300 = scmp.eq.s32.totalorder %s22, 7
      %p301 = por %p299, %p300
      %p302 = scmp.ne.s32.totalorder %s294, %s297
      %p303 = scmp.eq.s32.totalorder %s22, 0
      %p304 = por %p302, %p303
      %p305 = scmp.ne.s32.totalorder %s294, %s297
      %p306 = scmp.eq.s32.totalorder %s27, 7
      %p307 = por %p305, %p306
      %p308 = scmp.ne.s32.totalorder %s297, %s298
      %p309 = scmp.eq.s32.totalorder %s27, 0
      %p310 = por %p308, %p309
      %p311 = scmp.ne.s32.totalorder %s297, %s298
      %p312 = scmp.eq.s32.totalorder %s28, 7
      %p313 = por %p311, %p312
      %p315 = scmp.ne.s32.totalorder %s298, %s314
      %p316 = scmp.eq.s32.totalorder %s28, 0
      %p317 = por %p315, %p316
      %s318 = ssub.s32 %s30, %s37
      %p319 = scmp.eq.s32.totalorder %s318, 0
      %s321 = sadd.s32 %s320, 1
      %s322 = scalar_select %p319, %s320, %s321
      %p325 = pneg %p319
      %p326 = scmp.eq.s32.totalorder %s22, 7
      %p327 = por %p325, %p326
      %p328 = scmp.ne.s32.totalorder %s320, %s323
      %p329 = scmp.eq.s32.totalorder %s22, 0
      %p330 = por %p328, %p329
      %p331 = scmp.ne.s32.totalorder %s320, %s323
      %p332 = scmp.eq.s32.totalorder %s27, 7
      %p333 = por %p331, %p332
      %p334 = scmp.ne.s32.totalorder %s323, %s324
      %p335 = scmp.eq.s32.totalorder %s27, 0
      %p336 = por %p334, %p335
      %p337 = scmp.ne.s32.totalorder %s323, %s324
      %p338 = scmp.eq.s32.totalorder %s28, 7
      %p339 = por %p337, %p338
      %p341 = scmp.ne.s32.totalorder %s324, %s340
      %p342 = scmp.eq.s32.totalorder %s28, 0
      %p343 = por %p341, %p342
      %s345 = sadd.s32 %s344, 1
      %p348 = scmp.eq.s32.totalorder %s22, 7
      %p349 = scmp.ne.s32.totalorder %s344, %s346
      %p350 = scmp.eq.s32.totalorder %s22, 0
      %p351 = por %p349, %p350
      %p352 = scmp.ne.s32.totalorder %s344, %s346
      %p353 = scmp.eq.s32.totalorder %s27, 7
      %p354 = por %p352, %p353
      %p355 = scmp.ne.s32.totalorder %s346, %s347
      %p356 = scmp.eq.s32.totalorder %s27, 0
      %p357 = por %p355, %p356
      %p358 = scmp.ne.s32.totalorder %s346, %s347
      %p359 = scmp.eq.s32.totalorder %s28, 7
      %p360 = por %p358, %p359
      %p362 = scmp.ne.s32.totalorder %s347, %s361
      %p363 = scmp.eq.s32.totalorder %s28, 0
      %p364 = por %p362, %p363
      %s365 = ssub.s32 %s29, %s41
      %p366 = scmp.eq.s32.totalorder %s365, 0
      %s368 = sadd.s32 %s367, 1
      %s369 = scalar_select %p366, %s367, %s368
      %p372 = pneg %p366
      %p373 = scmp.eq.s32.totalorder %s22, 7
      %p374 = por %p372, %p373
      %p375 = scmp.ne.s32.totalorder %s367, %s370
      %p376 = scmp.eq.s32.totalorder %s22, 0
      %p377 = por %p375, %p376
      %p378 = scmp.ne.s32.totalorder %s367, %s370
      %p379 = scmp.eq.s32.totalorder %s27, 7
      %p380 = por %p378, %p379
      %p381 = scmp.ne.s32.totalorder %s370, %s371
      %p382 = scmp.eq.s32.totalorder %s27, 0
      %p383 = por %p381, %p382
      %p384 = scmp.ne.s32.totalorder %s370, %s371
      %p385 = scmp.eq.s32.totalorder %s28, 7
      %p386 = por %p384, %p385
      %p388 = scmp.ne.s32.totalorder %s371, %s387
      %p389 = scmp.eq.s32.totalorder %s28, 0
      %p390 = por %p388, %p389
      %p391 = scmp.le.s32.totalorder 1, %s22
      %p392 = scmp.lt.s32.totalorder %s22, 9
      %p393 = pnand %p391, %p392
      %p394 = pneg %p393
      // Predicated region
      $region9: #{tpu_custom_call.1} parent=5 // pred_check
        _
      $region10: #{tpu_custom_call.1} parent=5 // pred_check_branch
        %396 = sbr.rel (%p393) target = $region12
      $region11: #{tpu_custom_call.1} parent=5 // pred_region
        %s397 = ssub.s32 %s22, 1
        // Predicated region
        $region13: #{tpu_custom_call.1} parent=11 // pred_check
          %p398 = pneg %p133
        $region14: #{tpu_custom_call.1} parent=11 // pred_check_branch
          %400 = sbr.rel (%p398) target = $region16
        $region15: #{tpu_custom_call.1} parent=11 // pred_region
          _
        $region16: #{tpu_custom_call.1} parent=11 // pred_fallthru
          _
        // Predicated region
        $region17: #{tpu_custom_call.1} parent=11 // pred_check
          %p401 = pneg %p154
        $region18: #{tpu_custom_call.1} parent=11 // pred_check_branch
          %403 = sbr.rel (%p401) target = $region20
        $region19: #{tpu_custom_call.1} parent=11 // pred_region
          _
        $region20: #{tpu_custom_call.1} parent=11 // pred_fallthru
          _
        // Predicated region
        $region21: #{tpu_custom_call.1} parent=11 // pred_check
          %p404 = pneg %p357
        $region22: #{tpu_custom_call.1} parent=11 // pred_check_branch
          %406 = sbr.rel (%p404) target = $region24
        $region23: #{tpu_custom_call.1} parent=11 // pred_region
          _
        $region24: #{tpu_custom_call.1} parent=11 // pred_fallthru
          _
      $region12: #{tpu_custom_call.1} parent=5 // pred_fallthru
        _
      %p407 = scmp.lt.s32.totalorder %s22, 8
      // Predicated region
      $region25: #{tpu_custom_call.1} parent=5 // pred_check
        %p408 = pneg %p407
      $region26: #{tpu_custom_call.1} parent=5 // pred_check_branch
        %410 = sbr.rel (%p408) target = $region28
      $region27: #{tpu_custom_call.1} parent=5 // pred_region
        // Predicated region
        $region29: #{tpu_custom_call.1} parent=27 // pred_check
          %p411 = pneg %p54
        $region30: #{tpu_custom_call.1} parent=27 // pred_check_branch
          %413 = sbr.rel (%p411) target = $region32
        $region31: #{tpu_custom_call.1} parent=27 // pred_region
          %p414 = scmp.lt.s32.totalorder %s29, 1
          %s415 = scalar_select %p414, %s29, 1
          %s416 = smul.addr %s415, 8
          %s417 = scalar_lea.vmem %s0, %s416
        $region32: #{tpu_custom_call.1} parent=27 // pred_fallthru
          _
        // Predicated region
        $region33: #{tpu_custom_call.1} parent=27 // pred_check
          %p418 = pneg %p80
        $region34: #{tpu_custom_call.1} parent=27 // pred_check_branch
          %420 = sbr.rel (%p418) target = $region36
        $region35: #{tpu_custom_call.1} parent=27 // pred_region
          %p421 = scmp.lt.s32.totalorder %s29, 1
          %s422 = scalar_select %p421, %s29, 1
          %s423 = smul.addr %s422, 8
          %s424 = scalar_lea.vmem %s1, %s423
        $region36: #{tpu_custom_call.1} parent=27 // pred_fallthru
          _
        // Predicated region
        $region37: #{tpu_custom_call.1} parent=27 // pred_check
          %p425 = pneg %p106
        $region38: #{tpu_custom_call.1} parent=27 // pred_check_branch
          %427 = sbr.rel (%p425) target = $region40
        $region39: #{tpu_custom_call.1} parent=27 // pred_region
          %p428 = scmp.lt.s32.totalorder %s29, 1
          %s429 = scalar_select %p428, %s29, 1
          %s430 = smul.addr %s429, 8
          %s431 = scalar_lea.vmem %s2, %s430
        $region40: #{tpu_custom_call.1} parent=27 // pred_fallthru
          _
        // Predicated region
        $region41: #{tpu_custom_call.1} parent=27 // pred_check
          %p432 = pneg %p174
        $region42: #{tpu_custom_call.1} parent=27 // pred_check_branch
          %434 = sbr.rel (%p432) target = $region44
        $region43: #{tpu_custom_call.1} parent=27 // pred_region
          %p435 = scmp.lt.s32.totalorder %s30, 3
          %s436 = scalar_select %p435, %s30, 3
          %s437 = smul.addr %s436, 16
          %s438 = smul.addr %s437, 4
          %s439 = scalar_lea.vmem %s5, %s438
        $region44: #{tpu_custom_call.1} parent=27 // pred_fallthru
          _
        // Predicated region
        $region45: #{tpu_custom_call.1} parent=27 // pred_check
          %p440 = pneg %p200
        $region46: #{tpu_custom_call.1} parent=27 // pred_check_branch
          %442 = sbr.rel (%p440) target = $region48
        $region47: #{tpu_custom_call.1} parent=27 // pred_region
          %p443 = scmp.lt.s32.totalorder %s30, 3
          %s444 = scalar_select %p443, %s30, 3
          %s445 = scalar_lea.vmem %s6, %s444
        $region48: #{tpu_custom_call.1} parent=27 // pred_fallthru
          _
        // Predicated region
        $region49: #{tpu_custom_call.1} parent=27 // pred_check
          %p446 = pneg %p226
        $region50: #{tpu_custom_call.1} parent=27 // pred_check_branch
          %448 = sbr.rel (%p446) target = $region52
        $region51: #{tpu_custom_call.1} parent=27 // pred_region
          %p449 = scmp.lt.s32.totalorder %s30, 3
          %s450 = scalar_select %p449, %s30, 3
          %s451 = smul.addr %s450, 16
          %s452 = smul.addr %s451, 4
          %s453 = scalar_lea.vmem %s7, %s452
        $region52: #{tpu_custom_call.1} parent=27 // pred_fallthru
          _
        // Predicated region
        $region53: #{tpu_custom_call.1} parent=27 // pred_check
          %p454 = pneg %p252
        $region54: #{tpu_custom_call.1} parent=27 // pred_check_branch
          %456 = sbr.rel (%p454) target = $region56
        $region55: #{tpu_custom_call.1} parent=27 // pred_region
          %p457 = scmp.lt.s32.totalorder %s30, 3
          %s458 = scalar_select %p457, %s30, 3
          %s459 = scalar_lea.vmem %s8, %s458
        $region56: #{tpu_custom_call.1} parent=27 // pred_fallthru
          _
        // Predicated region
        $region57: #{tpu_custom_call.1} parent=27 // pred_check
          %p460 = pneg %p278
        $region58: #{tpu_custom_call.1} parent=27 // pred_check_branch
          %462 = sbr.rel (%p460) target = $region60
        $region59: #{tpu_custom_call.1} parent=27 // pred_region
          %p463 = scmp.lt.s32.totalorder %s30, 3
          %s464 = scalar_select %p463, %s30, 3
          %s465 = smul.addr %s464, 16
          %s466 = smul.addr %s465, 4
          %s467 = scalar_lea.vmem %s9, %s466
        $region60: #{tpu_custom_call.1} parent=27 // pred_fallthru
          _
        // Predicated region
        $region61: #{tpu_custom_call.1} parent=27 // pred_check
          %p468 = pneg %p304
        $region62: #{tpu_custom_call.1} parent=27 // pred_check_branch
          %470 = sbr.rel (%p468) target = $region64
        $region63: #{tpu_custom_call.1} parent=27 // pred_region
          %p471 = scmp.lt.s32.totalorder %s30, 3
          %s472 = scalar_select %p471, %s30, 3
          %s473 = scalar_lea.vmem %s10, %s472
        $region64: #{tpu_custom_call.1} parent=27 // pred_fallthru
          _
        // Predicated region
        $region65: #{tpu_custom_call.1} parent=27 // pred_check
          %p474 = pneg %p330
        $region66: #{tpu_custom_call.1} parent=27 // pred_check_branch
          %476 = sbr.rel (%p474) target = $region68
        $region67: #{tpu_custom_call.1} parent=27 // pred_region
          %p477 = scmp.lt.s32.totalorder %s30, 3
          %s478 = scalar_select %p477, %s30, 3
          %s479 = smul.addr %s478, 4
          %s480 = scalar_lea.vmem %s11, %s479
        $region68: #{tpu_custom_call.1} parent=27 // pred_fallthru
          _
      $region28: #{tpu_custom_call.1} parent=5 // pred_fallthru
        _
      %p481 = scmp.le.s32.totalorder 1, %s22
      %p482 = scmp.lt.s32.totalorder %s22, 9
      %p483 = pnand %p481, %p482
      %p484 = pneg %p483
      // Predicated region
      $region69: #{tpu_custom_call.1} parent=5 // pred_check
        _
      $region70: #{tpu_custom_call.1} parent=5 // pred_check_branch
        %486 = sbr.rel (%p483) target = $region72
      $region71: #{tpu_custom_call.1} parent=5 // pred_region
        %s487 = ssub.s32 %s22, 1
        %p488 = scmp.lt.s32.totalorder %s31, 1
        %s489 = scalar_select %p488, %s31, 1
        %s490 = smul.addr %s489, 8
        %s491 = scalar_lea.vmem %s0, %s490
        %p492 = pneg %p60
        %p493 = pneg %p57
        %p494 = scmp.lt.s32.totalorder %s31, 1
        %s495 = scalar_select %p494, %s31, 1
        %s496 = smul.addr %s495, 8
        %s497 = scalar_lea.vmem %s1, %s496
        %p498 = pneg %p86
        %p499 = pneg %p83
        %p500 = scmp.lt.s32.totalorder %s31, 1
        %s501 = scalar_select %p500, %s31, 1
        %s502 = smul.addr %s501, 8
        %s503 = scalar_lea.vmem %s2, %s502
        %p504 = pneg %p112
        %p505 = pneg %p109
        %p506 = pneg %p133
        %p507 = pneg %p130
        %p508 = pneg %p154
        %p509 = pneg %p151
        %p510 = scmp.lt.s32.totalorder %s32, 3
        %s511 = scalar_select %p510, %s32, 3
        %s512 = smul.addr %s511, 16
        %s513 = smul.addr %s512, 4
        %s514 = scalar_lea.vmem %s5, %s513
        %p515 = pneg %p180
        %p516 = pneg %p177
        %p517 = scmp.lt.s32.totalorder %s32, 3
        %s518 = scalar_select %p517, %s32, 3
        %s519 = scalar_lea.vmem %s6, %s518
        %p520 = pneg %p206
        %p521 = pneg %p203
        %p522 = scmp.lt.s32.totalorder %s32, 3
        %s523 = scalar_select %p522, %s32, 3
        %s524 = smul.addr %s523, 16
        %s525 = smul.addr %s524, 4
        %s526 = scalar_lea.vmem %s7, %s525
        %p527 = pneg %p232
        %p528 = pneg %p229
        %p529 = scmp.lt.s32.totalorder %s32, 3
        %s530 = scalar_select %p529, %s32, 3
        %s531 = scalar_lea.vmem %s8, %s530
        %p532 = pneg %p258
        %p533 = pneg %p255
        %p534 = scmp.lt.s32.totalorder %s32, 3
        %s535 = scalar_select %p534, %s32, 3
        %s536 = smul.addr %s535, 16
        %s537 = smul.addr %s536, 4
        %s538 = scalar_lea.vmem %s9, %s537
        %p539 = pneg %p284
        %p540 = pneg %p281
        %p541 = scmp.lt.s32.totalorder %s32, 3
        %s542 = scalar_select %p541, %s32, 3
        %s543 = scalar_lea.vmem %s10, %s542
        %p544 = pneg %p310
        %p545 = pneg %p307
        %p546 = scmp.lt.s32.totalorder %s32, 3
        %s547 = scalar_select %p546, %s32, 3
        %s548 = smul.addr %s547, 4
        %s549 = scalar_lea.vmem %s11, %s548
        %p550 = pneg %p336
        %p551 = pneg %p333
        %p552 = pneg %p357
        %p553 = pneg %p354
        %p554 = pneg %p383
        %p555 = pneg %p380
        %s556 = sand.u32 %s370, 1
        %s557 = scalar_lea.sflag [#allocation7], %s556
        %s558 = sand.u32 %s370, 1
        %s559 = smul.addr %s558, 8
        %s560 = scalar_lea.vmem [#allocation6], %s559
        %p561 = scmp.lt.s32.totalorder %s31, 1
        %s562 = scalar_select %p561, %s31, 1
        %s563 = smul.addr %s562, 8
        %s564 = scalar_lea.vmem %s0, %s563
        %p565 = scmp.lt.s32.totalorder %s31, 1
        %s566 = scalar_select %p565, %s31, 1
        %s567 = smul.addr %s566, 8
        %s568 = scalar_lea.vmem %s1, %s567
        %p569 = scmp.lt.s32.totalorder %s31, 1
        %s570 = scalar_select %p569, %s31, 1
        %s571 = smul.addr %s570, 8
        %s572 = scalar_lea.vmem %s2, %s571
        %p573 = scmp.lt.s32.totalorder %s32, 3
        %s574 = scalar_select %p573, %s32, 3
        %s575 = smul.addr %s574, 16
        %s576 = smul.addr %s575, 4
        %s577 = scalar_lea.vmem %s5, %s576
        %p578 = scmp.lt.s32.totalorder %s32, 3
        %s579 = scalar_select %p578, %s32, 3
        %s580 = scalar_lea.vmem %s6, %s579
        %p581 = scmp.lt.s32.totalorder %s32, 3
        %s582 = scalar_select %p581, %s32, 3
        %s583 = smul.addr %s582, 16
        %s584 = smul.addr %s583, 4
        %s585 = scalar_lea.vmem %s7, %s584
        %p586 = scmp.lt.s32.totalorder %s32, 3
        %s587 = scalar_select %p586, %s32, 3
        %s588 = scalar_lea.vmem %s8, %s587
        %p589 = scmp.lt.s32.totalorder %s32, 3
        %s590 = scalar_select %p589, %s32, 3
        %s591 = smul.addr %s590, 16
        %s592 = smul.addr %s591, 4
        %s593 = scalar_lea.vmem %s9, %s592
        %p594 = scmp.lt.s32.totalorder %s32, 3
        %s595 = scalar_select %p594, %s32, 3
        %s596 = scalar_lea.vmem %s10, %s595
        %p597 = scmp.lt.s32.totalorder %s32, 3
        %s598 = scalar_select %p597, %s32, 3
        %s599 = smul.addr %s598, 4
        %s600 = scalar_lea.vmem %s11, %s599
        %p602 = scmp.eq.s32.totalorder %s32, 0
        // Predicated region
        $region73: #{tpu_custom_call.1} parent=71 // pred_check
          %p603 = pneg %p602
        $region74: #{tpu_custom_call.1} parent=71 // pred_check_branch
          %605 = sbr.rel (%p603) target = $region76
        $region75: #{tpu_custom_call.1} parent=71 // pred_region
          %v606 = vld [vmem:[%s3] sm:$0xff]
          %v607 = vld [vmem:[%s4] sm:$0xff]
          %v608 = vld [vmem:[%s564] sm:$0xff]
          %v609 = vld [vmem:[%s568] sm:$0xff]
          %v610 = vmul.f32 %v608, %v606
          %611 = vrot.lane.b32.xlu0 %v608, 64
          %v612 = vpop.permute.xlu0 %611
          %v613 = vmul.f32 %v612, %v607
          %v614 = vadd.f32 %v610, %v613
          %v615 = vmul.f32 %v609, %v606
          %616 = vrot.lane.b32.xlu0 %v609, 64
          %v617 = vpop.permute.xlu0 %616
          %v618 = vmul.f32 %v617, %v607
          %v619 = vadd.f32 %v615, %v618
          %v620 = vpack.c.bf16 %v614, %v614
          %621 = vst [vmem:[#allocation2] sm:$0xf] %v620
          %v622 = vpack.c.bf16 %v619, %v619
          %623 = vst [vmem:[#allocation3] sm:$0xf] %v622
          %v624 = vld [vmem:[%s572] sm:$0xff]
          %v625 = vpack.c.bf16 %v624, %v624
          %626 = vst [vmem:[#allocation4] sm:$0xf] %v625
          %627 = vst [vmem:[#allocation5] sm:$0xff] 0.0
        $region76: #{tpu_custom_call.1} parent=71 // pred_fallthru
          _
        %v628 = vld [vmem:[#allocation2] sm:$0xf]
        %v629 = vld [vmem:[%s577] sm:$0xf]
        %v630 = vld [vmem:[%s577 + $0x4] sm:$0xf]
        %v631 = vld [vmem:[%s577 + $0x8] sm:$0xf]
        %v632 = vld [vmem:[%s577 + $0xc] sm:$0xf]
        %v633 = vld [vmem:[%s577 + $0x10] sm:$0xf]
        %v634 = vld [vmem:[%s577 + $0x14] sm:$0xf]
        %v635 = vld [vmem:[%s577 + $0x18] sm:$0xf]
        %v636 = vld [vmem:[%s577 + $0x1c] sm:$0xf]
        %v637 = vld [vmem:[%s577 + $0x20] sm:$0xf]
        %v638 = vld [vmem:[%s577 + $0x24] sm:$0xf]
        %v639 = vld [vmem:[%s577 + $0x28] sm:$0xf]
        %v640 = vld [vmem:[%s577 + $0x2c] sm:$0xf]
        %v641 = vld [vmem:[%s577 + $0x30] sm:$0xf]
        %v642 = vld [vmem:[%s577 + $0x34] sm:$0xf]
        %v643 = vld [vmem:[%s577 + $0x38] sm:$0xf]
        %v644 = vld [vmem:[%s577 + $0x3c] sm:$0xf]
        %v645 = vld [vmem:[%s580] sm:$0x1]
        %v647 = vperm.slane %v645, 0
        %v665 = vunpack.c.l.b16 %v629
        %v666 = vunpack.c.l.b16 %v630
        %v667 = vunpack.c.l.b16 %v631
        %v668 = vunpack.c.l.b16 %v632
        %v669 = vunpack.c.l.b16 %v633
        %v670 = vunpack.c.l.b16 %v634
        %v671 = vunpack.c.l.b16 %v635
        %v672 = vunpack.c.l.b16 %v636
        %v673 = vunpack.c.l.b16 %v637
        %v674 = vunpack.c.l.b16 %v638
        %v675 = vunpack.c.l.b16 %v639
        %v676 = vunpack.c.l.b16 %v640
        %v677 = vunpack.c.l.b16 %v641
        %v678 = vunpack.c.l.b16 %v642
        %v679 = vunpack.c.l.b16 %v643
        %v680 = vunpack.c.l.b16 %v644
        %v681 = vpack.c.b16 %v666, %v665
        %v682 = vpack.c.b16 %v668, %v667
        %v683 = vpack.c.b16 %v670, %v669
        %v684 = vpack.c.b16 %v672, %v671
        %v685 = vpack.c.b16 %v674, %v673
        %v686 = vpack.c.b16 %v676, %v675
        %v687 = vpack.c.b16 %v678, %v677
        %v688 = vpack.c.b16 %v680, %v679
        %697 = vmatpush.bf16.msra.mxu0 %v688
        %698 = vmatpush.bf16.msra.mxu0 %v687
        %699 = vmatpush.bf16.msra.mxu0 %v686
        %700 = vmatpush.bf16.msra.mxu0 %v685
        %701 = vmatpush.bf16.msra.mxu0 %v684
        %702 = vmatpush.bf16.msra.mxu0 %v683
        %703 = vmatpush.bf16.msra.mxu0 %v682
        %704 = vmatpush.bf16.msra.mxu0 %v681
        %705 = vmatmul.bf16.gmra.mxu0 %v628
        %v706 = vpop.f32.mrf.mxu0
        %v707 = vadd.f32 %v647, %v706
        %v708 = vpop.f32.mrf.mxu0
        %709 = vdwg.mxu0
        %v710 = vld [vmem:[#allocation3] sm:$0xf]
        %v711 = vld [vmem:[%s585] sm:$0xf]
        %v712 = vld [vmem:[%s585 + $0x4] sm:$0xf]
        %v713 = vld [vmem:[%s585 + $0x8] sm:$0xf]
        %v714 = vld [vmem:[%s585 + $0xc] sm:$0xf]
        %v715 = vld [vmem:[%s585 + $0x10] sm:$0xf]
        %v716 = vld [vmem:[%s585 + $0x14] sm:$0xf]
        %v717 = vld [vmem:[%s585 + $0x18] sm:$0xf]
        %v718 = vld [vmem:[%s585 + $0x1c] sm:$0xf]
        %v719 = vld [vmem:[%s585 + $0x20] sm:$0xf]
        %v720 = vld [vmem:[%s585 + $0x24] sm:$0xf]
        %v721 = vld [vmem:[%s585 + $0x28] sm:$0xf]
        %v722 = vld [vmem:[%s585 + $0x2c] sm:$0xf]
        %v723 = vld [vmem:[%s585 + $0x30] sm:$0xf]
        %v724 = vld [vmem:[%s585 + $0x34] sm:$0xf]
        %v725 = vld [vmem:[%s585 + $0x38] sm:$0xf]
        %v726 = vld [vmem:[%s585 + $0x3c] sm:$0xf]
        %v727 = vld [vmem:[%s588] sm:$0x1]
        %v729 = vperm.slane %v727, 0
        %v747 = vunpack.c.l.b16 %v711
        %v748 = vunpack.c.l.b16 %v712
        %v749 = vunpack.c.l.b16 %v713
        %v750 = vunpack.c.l.b16 %v714
        %v751 = vunpack.c.l.b16 %v715
        %v752 = vunpack.c.l.b16 %v716
        %v753 = vunpack.c.l.b16 %v717
        %v754 = vunpack.c.l.b16 %v718
        %v755 = vunpack.c.l.b16 %v719
        %v756 = vunpack.c.l.b16 %v720
        %v757 = vunpack.c.l.b16 %v721
        %v758 = vunpack.c.l.b16 %v722
        %v759 = vunpack.c.l.b16 %v723
        %v760 = vunpack.c.l.b16 %v724
        %v761 = vunpack.c.l.b16 %v725
        %v762 = vunpack.c.l.b16 %v726
        %v763 = vpack.c.b16 %v748, %v747
        %v764 = vpack.c.b16 %v750, %v749
        %v765 = vpack.c.b16 %v752, %v751
        %v766 = vpack.c.b16 %v754, %v753
        %v767 = vpack.c.b16 %v756, %v755
        %v768 = vpack.c.b16 %v758, %v757
        %v769 = vpack.c.b16 %v760, %v759
        %v770 = vpack.c.b16 %v762, %v761
        %779 = vmatpush.bf16.msra.mxu0 %v770
        %780 = vmatpush.bf16.msra.mxu0 %v769
        %781 = vmatpush.bf16.msra.mxu0 %v768
        %782 = vmatpush.bf16.msra.mxu0 %v767
        %783 = vmatpush.bf16.msra.mxu0 %v766
        %784 = vmatpush.bf16.msra.mxu0 %v765
        %785 = vmatpush.bf16.msra.mxu0 %v764
        %786 = vmatpush.bf16.msra.mxu0 %v763
        %787 = vmatmul.bf16.gmra.mxu0 %v710
        %v788 = vpop.f32.mrf.mxu0
        %v789 = vadd.f32 %v729, %v788
        %v790 = vpop.f32.mrf.mxu0
        %791 = vdwg.mxu0
        %v792 = vld [vmem:[#allocation4] sm:$0xf]
        %v793 = vld [vmem:[%s593] sm:$0xf]
        %v794 = vld [vmem:[%s593 + $0x4] sm:$0xf]
        %v795 = vld [vmem:[%s593 + $0x8] sm:$0xf]
        %v796 = vld [vmem:[%s593 + $0xc] sm:$0xf]
        %v797 = vld [vmem:[%s593 + $0x10] sm:$0xf]
        %v798 = vld [vmem:[%s593 + $0x14] sm:$0xf]
        %v799 = vld [vmem:[%s593 + $0x18] sm:$0xf]
        %v800 = vld [vmem:[%s593 + $0x1c] sm:$0xf]
        %v801 = vld [vmem:[%s593 + $0x20] sm:$0xf]
        %v802 = vld [vmem:[%s593 + $0x24] sm:$0xf]
        %v803 = vld [vmem:[%s593 + $0x28] sm:$0xf]
        %v804 = vld [vmem:[%s593 + $0x2c] sm:$0xf]
        %v805 = vld [vmem:[%s593 + $0x30] sm:$0xf]
        %v806 = vld [vmem:[%s593 + $0x34] sm:$0xf]
        %v807 = vld [vmem:[%s593 + $0x38] sm:$0xf]
        %v808 = vld [vmem:[%s593 + $0x3c] sm:$0xf]
        %v809 = vld [vmem:[%s596] sm:$0x1]
        %v811 = vperm.slane %v809, 0
        %v829 = vunpack.c.l.b16 %v793
        %v830 = vunpack.c.l.b16 %v794
        %v831 = vunpack.c.l.b16 %v795
        %v832 = vunpack.c.l.b16 %v796
        %v833 = vunpack.c.l.b16 %v797
        %v834 = vunpack.c.l.b16 %v798
        %v835 = vunpack.c.l.b16 %v799
        %v836 = vunpack.c.l.b16 %v800
        %v837 = vunpack.c.l.b16 %v801
        %v838 = vunpack.c.l.b16 %v802
        %v839 = vunpack.c.l.b16 %v803
        %v840 = vunpack.c.l.b16 %v804
        %v841 = vunpack.c.l.b16 %v805
        %v842 = vunpack.c.l.b16 %v806
        %v843 = vunpack.c.l.b16 %v807
        %v844 = vunpack.c.l.b16 %v808
        %v845 = vpack.c.b16 %v830, %v829
        %v846 = vpack.c.b16 %v832, %v831
        %v847 = vpack.c.b16 %v834, %v833
        %v848 = vpack.c.b16 %v836, %v835
        %v849 = vpack.c.b16 %v838, %v837
        %v850 = vpack.c.b16 %v840, %v839
        %v851 = vpack.c.b16 %v842, %v841
        %v852 = vpack.c.b16 %v844, %v843
        %861 = vmatpush.bf16.msra.mxu0 %v852
        %862 = vmatpush.bf16.msra.mxu0 %v851
        %863 = vmatpush.bf16.msra.mxu0 %v850
        %864 = vmatpush.bf16.msra.mxu0 %v849
        %865 = vmatpush.bf16.msra.mxu0 %v848
        %866 = vmatpush.bf16.msra.mxu0 %v847
        %867 = vmatpush.bf16.msra.mxu0 %v846
        %868 = vmatpush.bf16.msra.mxu0 %v845
        %869 = vmatmul.bf16.gmra.mxu0 %v792
        %v870 = vpop.f32.mrf.mxu0
        %v871 = vadd.f32 %v811, %v870
        %v872 = vpop.f32.mrf.mxu0
        %873 = vdwg.mxu0
        %v874 = vpack.c.bf16 %v707, %v707
        %v875 = vpack.c.bf16 %v789, %v789
        %vm876 = vcmask 64512
        %v878 = vsel %vm876, %v874, 0
        %v881 = vsel %vm876, %v875, 0
        %883 = vmatpush.bf16.xpose.msra.mxu0 0
        %884 = vmatpush.bf16.xpose.msra.mxu0 0
        %885 = vmatpush.bf16.xpose.msra.mxu0 0
        %886 = vmatpush.bf16.xpose.msra.mxu0 0
        %887 = vmatpush.bf16.xpose.msra.mxu0 0
        %888 = vmatpush.bf16.xpose.msra.mxu0 0
        %889 = vmatpush.bf16.xpose.msra.mxu0 0
        %890 = vmatpush.bf16.xpose.msra.mxu0 %v881
        %891 = vmatmul.bf16.gmra.mxu0 %v878
        %v892 = vpop.f32.mrf.mxu0
        %v893 = vadd.f32 0.0, %v892
        %v894 = vpop.f32.mrf.mxu0
        %895 = vdwg.mxu0
        %v896 = vsel %vm876, %v893, -inf
        %897 = vmax.xlane.f32.xlu0 %v896
        %v898 = vpop.xlane.xlu0 %897
        %v899 = vsub.f32 %v893, %v898
        %v900 = vmul.f32 %v899, 1.442695
        %v901 = vpow.pop %v900
        %v902 = vsel %vm876, %v901, 0.0
        %903 = vadd.xlane.f32.xlu0 %v902
        %v904 = vpop.xlane.xlu0 %903
        %v905 = vpack.c.bf16 %v901, %v901
        %v906 = vpack.c.bf16 %v871, %v871
        %v908 = vsel %vm876, %v905, 0
        %vm910 = vcmask 1043456
        %v912 = vsel %vm910, %v906, 0
        %914 = vmatpush.bf16.msra.mxu0 0
        %915 = vmatpush.bf16.msra.mxu0 0
        %916 = vmatpush.bf16.msra.mxu0 0
        %917 = vmatpush.bf16.msra.mxu0 0
        %918 = vmatpush.bf16.msra.mxu0 0
        %919 = vmatpush.bf16.msra.mxu0 0
        %920 = vmatpush.bf16.msra.mxu0 0
        %921 = vmatpush.bf16.msra.mxu0 %v912
        %922 = vmatmul.bf16.gmra.mxu0 %v908
        %v923 = vpop.f32.mrf.mxu0
        %v924 = vadd.f32 0.0, %v923
        %v925 = vpop.f32.mrf.mxu0
        %926 = vdwg.mxu0
        %v927 = vrcp.pop %v904
        %v928 = vmul.f32 %v924, %v927
        %v929 = vld [vmem:[#allocation5] sm:$0xff]
        %v930 = vpack.c.bf16 %v928, %v928
        %v931 = vld [vmem:[%s600] sm:$0xf]
        %v933 = vsel %vm876, %v930, 0
        %v936 = vsel %vm910, %v931, 0
        %938 = vmatpush.bf16.msra.mxu0 0
        %939 = vmatpush.bf16.msra.mxu0 0
        %940 = vmatpush.bf16.msra.mxu0 0
        %941 = vmatpush.bf16.msra.mxu0 0
        %942 = vmatpush.bf16.msra.mxu0 0
        %943 = vmatpush.bf16.msra.mxu0 0
        %944 = vmatpush.bf16.msra.mxu0 0
        %945 = vmatpush.bf16.msra.mxu0 %v936
        %946 = vmatmul.bf16.gmra.mxu0 %v933
        %v947 = vpop.f32.mrf.mxu0
        %v948 = vadd.f32 0.0, %v947
        %v949 = vpop.f32.mrf.mxu0
        %950 = vdwg.mxu0
        %v951 = vadd.f32 %v929, %v948
        %952 = vst [vmem:[#allocation5] sm:$0xff] %v951
        %p953 = scmp.eq.s32.totalorder %s32, 3
        // Predicated region
        $region77: #{tpu_custom_call.1} parent=71 // pred_check
          %p954 = pneg %p953
        $region78: #{tpu_custom_call.1} parent=71 // pred_check_branch
          %956 = sbr.rel (%p954) target = $region80
        $region79: #{tpu_custom_call.1} parent=71 // pred_region
          %v957 = vld [vmem:[#allocation5] sm:$0xff]
          %v958 = vld [vmem:[%s12] sm:$0x1]
          %v960 = vperm.slane %v958, 0
          %v962 = vadd.f32 %v957, %v960
          %963 = vst [vmem:[%s560] sm:$0xff] %v962
        $region80: #{tpu_custom_call.1} parent=71 // pred_fallthru
          _
        %s964 = sand.u32 %s370, 1
        %s965 = scalar_lea.sflag [#allocation7], %s964
        %s966 = sand.u32 %s370, 1
        %s967 = smul.addr %s966, 8
        %s968 = scalar_lea.vmem [#allocation6], %s967
        // Predicated region
        $region81: #{tpu_custom_call.1} parent=71 // pred_check
          %p969 = pneg %p380
        $region82: #{tpu_custom_call.1} parent=71 // pred_check_branch
          %971 = sbr.rel (%p969) target = $region84
        $region83: #{tpu_custom_call.1} parent=71 // pred_region
          %973 = vsyncadd %s965, 0
          %s974 = smul.addr %s31, 8
          %s975 = scalar_lea.hbm %s13, %s974
          %s977 = sshll.u32 %s968, 4
          %s978 = int_to_ptr.vmem [resolvable:$true] %s977
          %s979 = sshll.u32 %s975, 4
          %s980 = int_to_ptr.hbm [resolvable:$true] %s979
          %982 = dma.vmem_to_hbm [thread:$0]  %s978, 128, %s980, %s965
        $region84: #{tpu_custom_call.1} parent=71 // pred_fallthru
          _
      $region72: #{tpu_custom_call.1} parent=5 // pred_fallthru
        _
      %p983 = scmp.le.s32.totalorder 2, %s22
      // Predicated region
      $region85: #{tpu_custom_call.1} parent=5 // pred_check
        %p984 = pneg %p983
      $region86: #{tpu_custom_call.1} parent=5 // pred_check_branch
        %986 = sbr.rel (%p984) target = $region88
      $region87: #{tpu_custom_call.1} parent=5 // pred_region
        %s987 = ssub.s32 %s22, 2
        // Predicated region
        $region89: #{tpu_custom_call.1} parent=87 // pred_check
          %p988 = pneg %p386
        $region90: #{tpu_custom_call.1} parent=87 // pred_check_branch
          %990 = sbr.rel (%p988) target = $region92
        $region91: #{tpu_custom_call.1} parent=87 // pred_region
          %s991 = sand.u32 %s371, 1
          %s992 = scalar_lea.sflag [#allocation7], %s991
          %s993 = sand.u32 %s371, 1
          %s994 = smul.addr %s993, 8
          %s995 = scalar_lea.vmem [#allocation6], %s994
          %997 = dma.done %s992, 128
        $region92: #{tpu_custom_call.1} parent=87 // pred_fallthru
          _
      $region88: #{tpu_custom_call.1} parent=5 // pred_fallthru
        _
    $region6: #{tpu_custom_call.1} parent=1 // loop_footer
      %s26 = sadd.s32 1, %s22
    $region7: #{tpu_custom_call.1} parent=1 // loop_footer_branch
      %21 = sbr.rel target = $region3
    $region8: #{tpu_custom_call.1} parent=1 // loop_exit
      _
    %998 = vsyncpa [#allocation7], 1
    %s999 = scalar_lea.sflag [#allocation7], 1
    %1000 = vsyncpa %s999, 1

</llo_original>
